<compile_context>
chip_gen: v6e
topology: v6e:2x2x1
jax: 0.10.0
libtpu: 0.0.40
codegen_flags: <defaults>
</compile_context>

<pallas_src>
import jax
import jax.numpy as jnp
from jax.experimental import pallas as pl
from jax.experimental.pallas import tpu as pltpu


def _round_up(x, m):
    return ((x + m - 1) // m) * m


def node_apply_kernel(h_ref, w_ref, b_ref, o_ref):
    # h_ref: (TN, IN)  w_ref: (IN, OUTP)  b_ref: (1, OUTP)  o_ref: (TN, OUTP)
    y = jnp.dot(h_ref[...], w_ref[...], preferred_element_type=jnp.float32)
    y = y + b_ref[...]          # bias broadcast over rows (f32)
    y = jnp.maximum(y, 0.0)     # activation = ReLU
    # TODO(synk): nonzero dropout would need pltpu.prng_seed/prng_random_bits;
    # module default dropout=0.0 is an identity, so nothing to do here.
    o_ref[...] = y.astype(o_ref.dtype)


def node_apply(h, w, b, *, tile_n=512, compute_dtype=None):
    """Fused linear + ReLU (+ identity dropout).

    h: [N, in_feats], w: [in_feats, out_feats], b: [out_feats].
    Returns [N, out_feats] in h.dtype.
    """
    N, in_feats = h.shape
    out_feats = w.shape[1]
    out_dtype = h.dtype
    compute_dtype = compute_dtype or h.dtype

    # ---- lane-dense output: pad out_feats to a multiple of 128 lanes -------
    out_p = _round_up(out_feats, 128)

    # ---- row tiling: big tiles, no divisibility requirement on N -----------
    tile_n = _round_up(max(int(tile_n), 16), 16)
    if N <= tile_n:
        tn = _round_up(max(N, 16), 16)        # single whole-array block
    else:
        tn = tile_n
    n_pad = _round_up(N, tn)

    hc = h.astype(compute_dtype)
    if n_pad != N:
        hc = jnp.pad(hc, ((0, n_pad - N), (0, 0)))
    wc = w.astype(compute_dtype)
    bc = b.astype(jnp.float32).reshape(1, out_feats)
    if out_p != out_feats:
        wc = jnp.pad(wc, ((0, 0), (0, out_p - out_feats)))
        bc = jnp.pad(bc, ((0, 0), (0, out_p - out_feats)))

    # ---- explicit VMEM budget (double-buffered tiles + resident W / bias) --
    isz = lambda d: jnp.dtype(d).itemsize
    est = (2 * tn * in_feats * isz(compute_dtype)        # h row tiles
           + 2 * tn * out_p * isz(out_dtype)             # output tiles
           + 2 * in_feats * out_p * isz(compute_dtype)   # W (resident)
           + 2 * out_p * 4)                              # bias (resident)
    vmem_limit = int(min(48 * 2**20, max(est + (4 << 20), 32 << 20)))

    grid = (n_pad // tn,)
    out = pl.pallas_call(
        node_apply_kernel,
        out_shape=jax.ShapeDtypeStruct((n_pad, out_p), out_dtype),
        grid_spec=pltpu.PrefetchScalarGridSpec(
            num_scalar_prefetch=0,
            grid=grid,
            in_specs=[
                pl.BlockSpec((tn, in_feats), lambda i: (i, 0)),     # h row tile
                pl.BlockSpec((in_feats, out_p), lambda i: (0, 0)),  # full W (resident)
                pl.BlockSpec((1, out_p), lambda i: (0, 0)),         # bias (resident)
            ],
            out_specs=pl.BlockSpec((tn, out_p), lambda i: (i, 0)),
        ),
        compiler_params=pltpu.CompilerParams(
            dimension_semantics=("parallel",),
            vmem_limit_bytes=vmem_limit,
        ),
    )(hc, wc, bc)

    # Strip row / lane padding.  Padded bias/W columns are zero, so the sliced
    # region is exactly ReLU(h @ W + b); padded rows are never returned.
    return out[:N, :out_feats]


def node_apply_ref(h, w, b):
    return jnp.maximum(h @ w + b, 0.0)


if __name__ == "__main__":
    key = jax.random.PRNGKey(0)
    k_h, k_w, k_b = jax.random.split(key, 3)

    # Small, module-consistent shapes; N deliberately not a multiple of 8/128
    # to exercise the pad-and-slice path that replaced the divisibility assert.
    N, in_feats, out_feats = 200, 32, 64

    # Node features node.data['h']
    h = jax.random.normal(k_h, (N, in_feats), dtype=jnp.float32)

    # Deterministic nn.Linear-style init: U(-1/sqrt(in), 1/sqrt(in))
    bound = 1.0 / (in_feats ** 0.5)
    w = jax.random.uniform(k_w, (in_feats, out_feats),
                           minval=-bound, maxval=bound, dtype=jnp.float32)
    b = jax.random.uniform(k_b, (out_feats,),
                           minval=-bound, maxval=bound, dtype=jnp.float32)

    ref = node_apply_ref(h, w, b)

    # f32 path (exact module semantics).
    out_f32 = jax.block_until_ready(node_apply(h, w, b))
    assert out_f32.shape == (N, out_feats)
    assert jnp.allclose(out_f32, ref, atol=1e-5, rtol=1e-5), "f32 mismatch vs reference"

    # bf16 compute path (halves HBM traffic; f32 MXU accumulation + f32 bias).
    out_bf16 = jax.block_until_ready(
        node_apply(h, w, b, compute_dtype=jnp.bfloat16))
    ref_bf16 = jnp.maximum(
        h.astype(jnp.bfloat16).astype(jnp.float32)
        @ w.astype(jnp.bfloat16).astype(jnp.float32) + b, 0.0)
    assert out_bf16.shape == (N, out_feats)
    assert jnp.allclose(out_bf16, ref_bf16, atol=1e-3, rtol=1e-2), \
        "bf16 mismatch vs reference"

    print("KERNEL_OK")
</pallas_src>

<mosaic_0001>
module attributes {stable_mosaic.version = 11 : i64} {
  func.func @node_apply_kernel(%arg0: i32, %arg1: memref<208x32xf32, #tpu.memory_space<vmem>>, %arg2: memref<32x128xf32, #tpu.memory_space<vmem>>, %arg3: memref<1x128xf32, #tpu.memory_space<vmem>>, %arg4: memref<208x128xf32, #tpu.memory_space<vmem>>) attributes {dimension_semantics = [#tpu.dimension_semantics<parallel>], iteration_bounds = array<i64: 1>, scalar_prefetch = 0 : i64, scratch_operands = 0 : i64, tpu.core_type = #tpu.core_type<tc>, window_params = [{transform_indices = @transform_0, window_bounds = array<i64: 208, 32>}, {pipeline_mode = #tpu.pipeline_mode<synchronous>, transform_indices = @transform_1, window_bounds = array<i64: 32, 128>}, {pipeline_mode = #tpu.pipeline_mode<synchronous>, transform_indices = @transform_2, window_bounds = array<i64: 1, 128>}, {transform_indices = @transform_3, window_bounds = array<i64: 208, 128>}]} {
    %c0 = arith.constant 0 : index
    %c0_0 = arith.constant 0 : index
    %0 = vector.load %arg1[%c0, %c0_0] : memref<208x32xf32, #tpu.memory_space<vmem>>, vector<208x32xf32>
    %c0_1 = arith.constant 0 : index
    %c0_2 = arith.constant 0 : index
    %1 = vector.load %arg2[%c0_1, %c0_2] : memref<32x128xf32, #tpu.memory_space<vmem>>, vector<32x128xf32>
    %cst = arith.constant dense<0.000000e+00> : vector<208x128xf32>
    %2 = tpu.matmul %0, %1, %cst {dimension_numbers = #tpu.dot_dimension_numbers<[1], [0], [0], [1], [0, 0, 1, 1], [], []>} : vector<208x32xf32>, vector<32x128xf32>, vector<208x128xf32> -> vector<208x128xf32>
    %c0_3 = arith.constant 0 : index
    %c0_4 = arith.constant 0 : index
    %3 = vector.load %arg3[%c0_3, %c0_4] : memref<1x128xf32, #tpu.memory_space<vmem>>, vector<1x128xf32>
    %4 = vector.broadcast %3 : vector<1x128xf32> to vector<208x128xf32>
    %5 = arith.addf %2, %4 : vector<208x128xf32>
    %cst_5 = arith.constant 0.000000e+00 : f32
    %6 = vector.broadcast %cst_5 : f32 to vector<208x128xf32>
    %7 = arith.maximumf %5, %6 : vector<208x128xf32>
    %c0_6 = arith.constant 0 : index
    %c0_7 = arith.constant 0 : index
    %8 = vector.load %arg4[%c0_6, %c0_7] : memref<208x128xf32, #tpu.memory_space<vmem>>, vector<208x128xf32>
    tpu.vector_store %arg4[%c0_6, %c0_7], %7 {strides = array<i32>} : memref<208x128xf32, #tpu.memory_space<vmem>>, vector<208x128xf32>,
    return
  }
  func.func @transform_0(%arg0: i32) -> (i32, i32) {
    %c0_i32 = arith.constant 0 : i32
    %c0_i32_0 = arith.constant 0 : i32
    return %arg0, %c0_i32 : i32, i32
  }
  func.func @transform_1(%arg0: i32) -> (i32, i32) {
    %c0_i32 = arith.constant 0 : i32
    %c0_i32_0 = arith.constant 0 : i32
    %c0_i32_1 = arith.constant 0 : i32
    return %c0_i32, %c0_i32_0 : i32, i32
  }
  func.func @transform_2(%arg0: i32) -> (i32, i32) {
    %c0_i32 = arith.constant 0 : i32
    %c0_i32_0 = arith.constant 0 : i32
    %c0_i32_1 = arith.constant 0 : i32
    return %c0_i32, %c0_i32_0 : i32, i32
  }
  func.func @transform_3(%arg0: i32) -> (i32, i32) {
    %c0_i32 = arith.constant 0 : i32
    %c0_i32_0 = arith.constant 0 : i32
    return %arg0, %c0_i32 : i32, i32
  }
}

</mosaic_0001>

<llo_original>
// kernel: tpu_custom_call.1
$region0: #{tpu_custom_call.1}
  #allocation0 [shape = 'u32[]', space=smem, size = 0x4, offset = 0x4, fixed_abs, tag = 'smem constant byte address 0x4 - core index']
  #allocation1 [shape = 'u32[144,128]{1,0:T(1,128)}', space=vmem, size = 0x12000, scoped, tag = 'internal scratch']
  %s0 = inlined_call_operand.vmem [shape: f32[208,32], index: 0, kind: input, shape index: {}]
  %s1 = inlined_call_operand.vmem [shape: f32[32,128], index: 1, kind: input, shape index: {}]
  %s2 = inlined_call_operand.vmem [shape: f32[1,128], index: 2, kind: input, shape index: {}]
  %s3 = inlined_call_operand.hbm [shape: f32[208,128], index: 3, kind: output, shape index: {}]
  %s4 = sld [smem:[#allocation0]]
  $region22: #{tpu_custom_call.1} parent=0
    _
  %s6 = ssub.s32 1, %s4
  %s7 = scalar_select 0, %s6, %s4
  $region1: #{tpu_custom_call.1} parent=0
    #allocation2 [shape = 'u8[106496]{0}', space=vmem, size = 0x1a000, scoped, tag = 'output window, operand 0, single buffered']
    #allocation3 [shape = 's32[1]{0}', space=sflag, size = 0x4, scoped, tag = 'scoped memory for tpu_custom_call.1']
    %8 = vsyncpa [#allocation3], 0
    // Predicated region
    $region2: #{tpu_custom_call.1} parent=1 // pred_check
      _
    $region3: #{tpu_custom_call.1} parent=1 // pred_check_branch
      %10 = sbr.rel (0) target = $region5
    $region4: #{tpu_custom_call.1} parent=1 // pred_region
      _
    $region5: #{tpu_custom_call.1} parent=1 // pred_fallthru
      _
    // Predicated region
    $region6: #{tpu_custom_call.1} parent=1 // pred_check
      _
    $region7: #{tpu_custom_call.1} parent=1 // pred_check_branch
      %12 = sbr.rel (0) target = $region9
    $region8: #{tpu_custom_call.1} parent=1 // pred_region
      _
    $region9: #{tpu_custom_call.1} parent=1 // pred_fallthru
      _
    // Predicated region
    $region10: #{tpu_custom_call.1} parent=1 // pred_check
      _
    $region11: #{tpu_custom_call.1} parent=1 // pred_check_branch
      %14 = sbr.rel (0) target = $region13
    $region12: #{tpu_custom_call.1} parent=1 // pred_region
      _
    $region13: #{tpu_custom_call.1} parent=1 // pred_fallthru
      _
    %v15 = vld [vmem:[%s0] sm:$0xff]
    %v16 = vld [vmem:[%s0 + $0x8] sm:$0xff]
    %v17 = vld [vmem:[%s0 + $0x10] sm:$0xff]
    %v18 = vld [vmem:[%s0 + $0x18] sm:$0xff]
    %v19 = vld [vmem:[%s0 + $0x20] sm:$0xff]
    %v20 = vld [vmem:[%s0 + $0x28] sm:$0xff]
    %v21 = vld [vmem:[%s0 + $0x30] sm:$0xff]
    %v22 = vld [vmem:[%s0 + $0x38] sm:$0xff]
    %v23 = vld [vmem:[%s0 + $0x40] sm:$0xff]
    %v24 = vld [vmem:[%s0 + $0x48] sm:$0xff]
    %v25 = vld [vmem:[%s0 + $0x50] sm:$0xff]
    %v26 = vld [vmem:[%s0 + $0x58] sm:$0xff]
    %v27 = vld [vmem:[%s0 + $0x60] sm:$0xff]
    %v28 = vld [vmem:[%s0 + $0x68] sm:$0xff]
    %v29 = vld [vmem:[%s0 + $0x70] sm:$0xff]
    %v30 = vld [vmem:[%s0 + $0x78] sm:$0xff]
    %v31 = vld [vmem:[%s0 + $0x80] sm:$0xff]
    %v32 = vld [vmem:[%s0 + $0x88] sm:$0xff]
    %v33 = vld [vmem:[%s0 + $0x90] sm:$0xff]
    %v34 = vld [vmem:[%s0 + $0x98] sm:$0xff]
    %v35 = vld [vmem:[%s0 + $0xa0] sm:$0xff]
    %v36 = vld [vmem:[%s0 + $0xa8] sm:$0xff]
    %v37 = vld [vmem:[%s0 + $0xb0] sm:$0xff]
    %v38 = vld [vmem:[%s0 + $0xb8] sm:$0xff]
    %v39 = vld [vmem:[%s0 + $0xc0] sm:$0xff]
    %v40 = vld [vmem:[%s0 + $0xc8] sm:$0xff]
    %v41 = vld [vmem:[%s1] sm:$0xff]
    %v42 = vld [vmem:[%s1 + $0x8] sm:$0xff]
    %v43 = vld [vmem:[%s1 + $0x10] sm:$0xff]
    %v44 = vld [vmem:[%s1 + $0x18] sm:$0xff]
    %v45 = vld [vmem:[%s2] sm:$0x1]
    %v47 = vlaneseq
    %v48 = vshrl.u32 %v47, 7
    %v49 = vsub.s32 0, %v48
    %v50 = vrot.slane %v45, %v49
    %vm52 = vcmask 261120
    %v54 = vsel %vm52, %v15, 0
    %v57 = vsel %vm52, %v16, 0
    %v60 = vsel %vm52, %v17, 0
    %v63 = vsel %vm52, %v18, 0
    %v66 = vsel %vm52, %v19, 0
    %v69 = vsel %vm52, %v20, 0
    %v72 = vsel %vm52, %v21, 0
    %v75 = vsel %vm52, %v22, 0
    %v78 = vsel %vm52, %v23, 0
    %v81 = vsel %vm52, %v24, 0
    %v84 = vsel %vm52, %v25, 0
    %v87 = vsel %vm52, %v26, 0
    %v90 = vsel %vm52, %v27, 0
    %v93 = vsel %vm52, %v28, 0
    %v96 = vsel %vm52, %v29, 0
    %v99 = vsel %vm52, %v30, 0
    %v102 = vsel %vm52, %v31, 0
    %v105 = vsel %vm52, %v32, 0
    %v108 = vsel %vm52, %v33, 0
    %v111 = vsel %vm52, %v34, 0
    %v114 = vsel %vm52, %v35, 0
    %v117 = vsel %vm52, %v36, 0
    %v120 = vsel %vm52, %v37, 0
    %v123 = vsel %vm52, %v38, 0
    %v126 = vsel %vm52, %v39, 0
    %v129 = vsel %vm52, %v40, 0
    %131 = vmatprep.subr.mxu0 0.0
    %132 = vmatpush1.msra.mxu0 0.0
    %133 = vmatprep.subr.mxu0 0.0
    %134 = vmatpush1.msra.mxu0 0.0
    %135 = vmatprep.subr.mxu0 0.0
    %136 = vmatpush1.msra.mxu0 0.0
    %137 = vmatprep.subr.mxu0 0.0
    %138 = vmatpush1.msra.mxu0 0.0
    %139 = vmatprep.subr.mxu0 0.0
    %140 = vmatpush1.msra.mxu0 0.0
    %141 = vmatprep.subr.mxu0 0.0
    %142 = vmatpush1.msra.mxu0 0.0
    %143 = vmatprep.subr.mxu0 0.0
    %144 = vmatpush1.msra.mxu0 0.0
    %145 = vmatprep.subr.mxu0 0.0
    %146 = vmatpush1.msra.mxu0 0.0
    %147 = vmatprep.subr.mxu0 0.0
    %148 = vmatpush1.msra.mxu0 0.0
    %149 = vmatprep.subr.mxu0 0.0
    %150 = vmatpush1.msra.mxu0 0.0
    %151 = vmatprep.subr.mxu0 0.0
    %152 = vmatpush1.msra.mxu0 0.0
    %153 = vmatprep.subr.mxu0 0.0
    %154 = vmatpush1.msra.mxu0 0.0
    %155 = vmatprep.subr.mxu0 0.0
    %156 = vmatpush1.msra.mxu0 %v44
    %157 = vmatprep.subr.mxu0 0.0
    %158 = vmatpush1.msra.mxu0 %v43
    %159 = vmatprep.subr.mxu0 0.0
    %160 = vmatpush1.msra.mxu0 %v42
    %161 = vmatprep.subr.mxu0 0.0
    %162 = vmatpush1.msra.mxu0 %v41
    %163 = vmatprep.subr.mxu0 0.0
    %164 = vmatpush2.msra.mxu0 0.0
    %165 = vmatprep.subr.mxu0 0.0
    %166 = vmatpush2.msra.mxu0 0.0
    %167 = vmatprep.subr.mxu0 0.0
    %168 = vmatpush2.msra.mxu0 0.0
    %169 = vmatprep.subr.mxu0 0.0
    %170 = vmatpush2.msra.mxu0 0.0
    %171 = vmatprep.subr.mxu0 0.0
    %172 = vmatpush2.msra.mxu0 0.0
    %173 = vmatprep.subr.mxu0 0.0
    %174 = vmatpush2.msra.mxu0 0.0
    %175 = vmatprep.subr.mxu0 0.0
    %176 = vmatpush2.msra.mxu0 0.0
    %177 = vmatprep.subr.mxu0 0.0
    %178 = vmatpush2.msra.mxu0 0.0
    %179 = vmatprep.subr.mxu0 0.0
    %180 = vmatpush2.msra.mxu0 0.0
    %181 = vmatprep.subr.mxu0 0.0
    %182 = vmatpush2.msra.mxu0 0.0
    %183 = vmatprep.subr.mxu0 0.0
    %184 = vmatpush2.msra.mxu0 0.0
    %185 = vmatprep.subr.mxu0 0.0
    %186 = vmatpush2.msra.mxu0 0.0
    %187 = vmatprep.subr.mxu0 0.0
    %188 = vmatpush2.msra.mxu0 0.0
    %189 = vmatprep.subr.mxu0 0.0
    %190 = vmatpush2.msra.mxu0 0.0
    %191 = vmatprep.subr.mxu0 0.0
    %192 = vmatpush2.msra.mxu0 0.0
    %193 = vmatprep.subr.mxu0 0.0
    %194 = vmatpush2.msra.mxu0 0.0
    %195 = vmatprep.mubr.f32.mxu0 0.0
    %196 = vmatmul.mubr.f32.gmra.mxu0 %v54
    %v197 = vpop.f32.mrf.mxu0
    %v198 = vadd.f32 %v50, %v197
    %v199 = vpop.f32.mrf.mxu0
    %200 = vmatprep.mubr.f32.mxu0 0.0
    %201 = vmatmul.mubr.f32.gmra.mxu0 %v57
    %v202 = vpop.f32.mrf.mxu0
    %v203 = vadd.f32 %v50, %v202
    %v204 = vpop.f32.mrf.mxu0
    %205 = vmatprep.mubr.f32.mxu0 0.0
    %206 = vmatmul.mubr.f32.gmra.mxu0 %v60
    %v207 = vpop.f32.mrf.mxu0
    %v208 = vadd.f32 %v50, %v207
    %v209 = vpop.f32.mrf.mxu0
    %210 = vmatprep.mubr.f32.mxu0 0.0
    %211 = vmatmul.mubr.f32.gmra.mxu0 %v63
    %v212 = vpop.f32.mrf.mxu0
    %v213 = vadd.f32 %v50, %v212
    %v214 = vpop.f32.mrf.mxu0
    %215 = vmatprep.mubr.f32.mxu0 0.0
    %216 = vmatmul.mubr.f32.gmra.mxu0 %v66
    %v217 = vpop.f32.mrf.mxu0
    %v218 = vadd.f32 %v50, %v217
    %v219 = vpop.f32.mrf.mxu0
    %220 = vmatprep.mubr.f32.mxu0 0.0
    %221 = vmatmul.mubr.f32.gmra.mxu0 %v69
    %v222 = vpop.f32.mrf.mxu0
    %v223 = vadd.f32 %v50, %v222
    %v224 = vpop.f32.mrf.mxu0
    %225 = vmatprep.mubr.f32.mxu0 0.0
    %226 = vmatmul.mubr.f32.gmra.mxu0 %v72
    %v227 = vpop.f32.mrf.mxu0
    %v228 = vadd.f32 %v50, %v227
    %v229 = vpop.f32.mrf.mxu0
    %230 = vmatprep.mubr.f32.mxu0 0.0
    %231 = vmatmul.mubr.f32.gmra.mxu0 %v75
    %v232 = vpop.f32.mrf.mxu0
    %v233 = vadd.f32 %v50, %v232
    %v234 = vpop.f32.mrf.mxu0
    %235 = vmatprep.mubr.f32.mxu0 0.0
    %236 = vmatmul.mubr.f32.gmra.mxu0 %v78
    %v237 = vpop.f32.mrf.mxu0
    %v238 = vadd.f32 %v50, %v237
    %v239 = vpop.f32.mrf.mxu0
    %240 = vmatprep.mubr.f32.mxu0 0.0
    %241 = vmatmul.mubr.f32.gmra.mxu0 %v81
    %v242 = vpop.f32.mrf.mxu0
    %v243 = vadd.f32 %v50, %v242
    %v244 = vpop.f32.mrf.mxu0
    %245 = vmatprep.mubr.f32.mxu0 0.0
    %246 = vmatmul.mubr.f32.gmra.mxu0 %v84
    %v247 = vpop.f32.mrf.mxu0
    %v248 = vadd.f32 %v50, %v247
    %v249 = vpop.f32.mrf.mxu0
    %250 = vmatprep.mubr.f32.mxu0 0.0
    %251 = vmatmul.mubr.f32.gmra.mxu0 %v87
    %v252 = vpop.f32.mrf.mxu0
    %v253 = vadd.f32 %v50, %v252
    %v254 = vpop.f32.mrf.mxu0
    %255 = vmatprep.mubr.f32.mxu0 0.0
    %256 = vmatmul.mubr.f32.gmra.mxu0 %v90
    %v257 = vpop.f32.mrf.mxu0
    %v258 = vadd.f32 %v50, %v257
    %v259 = vpop.f32.mrf.mxu0
    %260 = vmatprep.mubr.f32.mxu0 0.0
    %261 = vmatmul.mubr.f32.gmra.mxu0 %v93
    %v262 = vpop.f32.mrf.mxu0
    %v263 = vadd.f32 %v50, %v262
    %v264 = vpop.f32.mrf.mxu0
    %265 = vmatprep.mubr.f32.mxu0 0.0
    %266 = vmatmul.mubr.f32.gmra.mxu0 %v96
    %v267 = vpop.f32.mrf.mxu0
    %v268 = vadd.f32 %v50, %v267
    %v269 = vpop.f32.mrf.mxu0
    %270 = vmatprep.mubr.f32.mxu0 0.0
    %271 = vmatmul.mubr.f32.gmra.mxu0 %v99
    %v272 = vpop.f32.mrf.mxu0
    %v273 = vadd.f32 %v50, %v272
    %v274 = vpop.f32.mrf.mxu0
    %275 = vmatprep.mubr.f32.mxu0 0.0
    %276 = vmatmul.mubr.f32.gmra.mxu0 %v102
    %v277 = vpop.f32.mrf.mxu0
    %v278 = vadd.f32 %v50, %v277
    %v279 = vpop.f32.mrf.mxu0
    %280 = vmatprep.mubr.f32.mxu0 0.0
    %281 = vmatmul.mubr.f32.gmra.mxu0 %v105
    %v282 = vpop.f32.mrf.mxu0
    %v283 = vadd.f32 %v50, %v282
    %v284 = vpop.f32.mrf.mxu0
    %285 = vmatprep.mubr.f32.mxu0 0.0
    %286 = vmatmul.mubr.f32.gmra.mxu0 %v108
    %v287 = vpop.f32.mrf.mxu0
    %v288 = vadd.f32 %v50, %v287
    %v289 = vpop.f32.mrf.mxu0
    %290 = vmatprep.mubr.f32.mxu0 0.0
    %291 = vmatmul.mubr.f32.gmra.mxu0 %v111
    %v292 = vpop.f32.mrf.mxu0
    %v293 = vadd.f32 %v50, %v292
    %v294 = vpop.f32.mrf.mxu0
    %295 = vmatprep.mubr.f32.mxu0 0.0
    %296 = vmatmul.mubr.f32.gmra.mxu0 %v114
    %v297 = vpop.f32.mrf.mxu0
    %v298 = vadd.f32 %v50, %v297
    %v299 = vpop.f32.mrf.mxu0
    %300 = vmatprep.mubr.f32.mxu0 0.0
    %301 = vmatmul.mubr.f32.gmra.mxu0 %v117
    %v302 = vpop.f32.mrf.mxu0
    %v303 = vadd.f32 %v50, %v302
    %v304 = vpop.f32.mrf.mxu0
    %305 = vmatprep.mubr.f32.mxu0 0.0
    %306 = vmatmul.mubr.f32.gmra.mxu0 %v120
    %v307 = vpop.f32.mrf.mxu0
    %v308 = vadd.f32 %v50, %v307
    %v309 = vpop.f32.mrf.mxu0
    %310 = vmatprep.mubr.f32.mxu0 0.0
    %311 = vmatmul.mubr.f32.gmra.mxu0 %v123
    %v312 = vpop.f32.mrf.mxu0
    %v313 = vadd.f32 %v50, %v312
    %v314 = vpop.f32.mrf.mxu0
    %315 = vmatprep.mubr.f32.mxu0 0.0
    %316 = vmatmul.mubr.f32.gmra.mxu0 %v126
    %v317 = vpop.f32.mrf.mxu0
    %v318 = vadd.f32 %v50, %v317
    %v319 = vpop.f32.mrf.mxu0
    %320 = vmatprep.mubr.f32.mxu0 0.0
    %321 = vmatmul.mubr.f32.gmra.mxu0 %v129
    %v322 = vpop.f32.mrf.mxu0
    %v323 = vadd.f32 %v50, %v322
    %v324 = vpop.f32.mrf.mxu0
    %325 = vdwg.mxu0
    %v326 = vmax.f32 %v198, 0.0
    %v327 = vmax.f32 %v203, 0.0
    %v328 = vmax.f32 %v208, 0.0
    %v329 = vmax.f32 %v213, 0.0
    %v330 = vmax.f32 %v218, 0.0
    %v331 = vmax.f32 %v223, 0.0
    %v332 = vmax.f32 %v228, 0.0
    %v333 = vmax.f32 %v233, 0.0
    %v334 = vmax.f32 %v238, 0.0
    %v335 = vmax.f32 %v243, 0.0
    %v336 = vmax.f32 %v248, 0.0
    %v337 = vmax.f32 %v253, 0.0
    %v338 = vmax.f32 %v258, 0.0
    %v339 = vmax.f32 %v263, 0.0
    %v340 = vmax.f32 %v268, 0.0
    %v341 = vmax.f32 %v273, 0.0
    %v342 = vmax.f32 %v278, 0.0
    %v343 = vmax.f32 %v283, 0.0
    %v344 = vmax.f32 %v288, 0.0
    %v345 = vmax.f32 %v293, 0.0
    %v346 = vmax.f32 %v298, 0.0
    %v347 = vmax.f32 %v303, 0.0
    %v348 = vmax.f32 %v308, 0.0
    %v349 = vmax.f32 %v313, 0.0
    %v350 = vmax.f32 %v318, 0.0
    %v351 = vmax.f32 %v323, 0.0
    %352 = vst [vmem:[#allocation2] sm:$0xff] %v326
    %353 = vst [vmem:[#allocation2 + $0x8] sm:$0xff] %v327
    %354 = vst [vmem:[#allocation2 + $0x10] sm:$0xff] %v328
    %355 = vst [vmem:[#allocation2 + $0x18] sm:$0xff] %v329
    %356 = vst [vmem:[#allocation2 + $0x20] sm:$0xff] %v330
    %357 = vst [vmem:[#allocation2 + $0x28] sm:$0xff] %v331
    %358 = vst [vmem:[#allocation2 + $0x30] sm:$0xff] %v332
    %359 = vst [vmem:[#allocation2 + $0x38] sm:$0xff] %v333
    %360 = vst [vmem:[#allocation2 + $0x40] sm:$0xff] %v334
    %361 = vst [vmem:[#allocation2 + $0x48] sm:$0xff] %v335
    %362 = vst [vmem:[#allocation2 + $0x50] sm:$0xff] %v336
    %363 = vst [vmem:[#allocation2 + $0x58] sm:$0xff] %v337
    %364 = vst [vmem:[#allocation2 + $0x60] sm:$0xff] %v338
    %365 = vst [vmem:[#allocation2 + $0x68] sm:$0xff] %v339
    %366 = vst [vmem:[#allocation2 + $0x70] sm:$0xff] %v340
    %367 = vst [vmem:[#allocation2 + $0x78] sm:$0xff] %v341
    %368 = vst [vmem:[#allocation2 + $0x80] sm:$0xff] %v342
    %369 = vst [vmem:[#allocation2 + $0x88] sm:$0xff] %v343
    %370 = vst [vmem:[#allocation2 + $0x90] sm:$0xff] %v344
    %371 = vst [vmem:[#allocation2 + $0x98] sm:$0xff] %v345
    %372 = vst [vmem:[#allocation2 + $0xa0] sm:$0xff] %v346
    %373 = vst [vmem:[#allocation2 + $0xa8] sm:$0xff] %v347
    %374 = vst [vmem:[#allocation2 + $0xb0] sm:$0xff] %v348
    %375 = vst [vmem:[#allocation2 + $0xb8] sm:$0xff] %v349
    %376 = vst [vmem:[#allocation2 + $0xc0] sm:$0xff] %v350
    %377 = vst [vmem:[#allocation2 + $0xc8] sm:$0xff] %v351
    // Predicated region
    $region14: #{tpu_custom_call.1} parent=1 // pred_check
      _
    $region15: #{tpu_custom_call.1} parent=1 // pred_check_branch
      %379 = sbr.rel (0) target = $region17
    $region16: #{tpu_custom_call.1} parent=1 // pred_region
      %s381 = ssub.s32 3328, 3328
      %382 = vsyncadd [#allocation3], %s381
      %s383 = sshll.u32 [#allocation2], 4
      %s384 = int_to_ptr.vmem [resolvable:$true] %s383
      %389 = dma.vmem_to_hbm [thread:$0]  %s384, 3328, %s3, [#allocation3], 128, 128, 8
    $region17: #{tpu_custom_call.1} parent=1 // pred_fallthru
      _
    // Predicated region
    $region18: #{tpu_custom_call.1} parent=1 // pred_check
      _
    $region19: #{tpu_custom_call.1} parent=1 // pred_check_branch
      %391 = sbr.rel (0) target = $region21
    $region20: #{tpu_custom_call.1} parent=1 // pred_region
      %392 = dma.done [#allocation3], 3328
    $region21: #{tpu_custom_call.1} parent=1 // pred_fallthru
      _
    %393 = vsyncpa [#allocation3], 1

</llo_original>
